<compile_context>
chip_gen: v7x
topology: tpu7x:2x2x1
jax: 0.10.0
libtpu: 0.0.40
codegen_flags: <defaults>
</compile_context>

<pallas_src>
import jax
import jax.numpy as jnp
from jax.experimental import pallas as pl
from jax.experimental.pallas import tpu as pltpu

LANES = 128               # vreg lane width
DEFAULT_TILE_ROWS = 2048  # ~1 MiB (f32) per parameter tile; real tuning knob
DEFAULT_NUM_SPLITS = 2    # leading "parallel" axis: 2 TCs on v7x, cheap serial loop elsewhere


def _round_up(a, b):
    return ((a + b - 1) // b) * b


def _row_align(dtype):
    # f32 sublane tile is 8 rows; sub-32-bit dtypes pack 2 rows/sublane -> use 16.
    return 16 if jnp.dtype(dtype).itemsize < 4 else 8


def _plan(n_elems, tile_rows, num_splits, dtype):
    align = _row_align(dtype)
    rows_needed = max(1, pl.cdiv(n_elems, LANES))
    per_split = pl.cdiv(rows_needed, num_splits)
    tr = min(_round_up(tile_rows, align), _round_up(per_split, align))
    rows_per_split = _round_up(per_split, tr)
    return tr, rows_per_split


# ---------------- slab packing (call ONCE per parameter update) ----------------
def pack_params(model_params, *, tile_rows=DEFAULT_TILE_ROWS,
                num_splits=DEFAULT_NUM_SPLITS):
    """Flatten + zero-pad all parameters into a lane-dense slab of shape
    (num_splits, rows_per_split, 128).

    Rebuilding this slab every loss call reads+writes the whole model in HBM again
    (~3x traffic for a memory-bound reduction) — pack once, reuse across calls.
    Zero padding is exact for both |p| and p^2 sums.  bf16 params stay bf16.
    """
    dtypes = {jnp.dtype(p.dtype) for p in model_params}
    slab_dtype = jnp.bfloat16 if dtypes == {jnp.dtype(jnp.bfloat16)} else jnp.float32
    flat = jnp.concatenate([jnp.ravel(p).astype(slab_dtype) for p in model_params])
    n = flat.shape[0]
    tr, rows_per_split = _plan(n, tile_rows, num_splits, slab_dtype)
    total = num_splits * rows_per_split * LANES
    flat = jnp.pad(flat, (0, total - n))
    return flat.reshape(num_splits, rows_per_split, LANES)


# ---------------- Pallas kernel ----------------
def _loss_kernel(params_ref, x_ref, l1_ref, l2_ref, ent_ref):
    """One fused call: streamed L1/L2 parameter reduction + softmax-entropy sum.

    params_ref : VMEM (1, tile_rows, 128)   one tile of shard c of the param slab
    x_ref      : VMEM (B, C) f32            logits, resident across the grid
    l1_ref     : VMEM-resident out (1, 8, 128) f32   per-shard L1 partial (vreg shape)
    l2_ref     : VMEM-resident out (1, 8, 128) f32   per-shard L2 partial (vreg shape)
    ent_ref    : out (1, 1, 1) f32          sum(softmax*log_softmax) (shard 0 only)
    """
    c = pl.program_id(0)              # parameter-stream shard (megacore-parallel on v7x)
    i = pl.program_id(1)              # reduction step within the shard
    last = pl.num_programs(1) - 1

    @pl.when(i == 0)
    def _():
        l1_ref[...] = jnp.zeros_like(l1_ref)
        l2_ref[...] = jnp.zeros_like(l2_ref)

    # (1, tile_rows, 128) -> (tile_rows/8, 8, 128); the sum over the leading axis is
    # pure VALU vreg adds.  No per-step cross-lane reduce, no masked scalar store —
    # the streaming loop stays vld/VALU only so DMA remains the binding slot.
    p = params_ref[...].astype(jnp.float32).reshape(-1, 8, LANES)
    l1_ref[...] += jnp.sum(jnp.abs(p), axis=0)[None]
    l2_ref[...] += jnp.sum(p * p, axis=0)[None]

    # Entropy term: one pass — softmax and log_softmax share exp(x - m) and the row sum.
    # Computed once, by shard 0, at its final step; other shards zero their slot.
    # TODO(synk): stream/tile the logits if B*C ever gets large (it competes with the
    # param tile inside v7x's 64 MiB VMEM); resident block is right for loss-sized x.
    @pl.when((i == last) & (c != 0))
    def _():
        ent_ref[...] = jnp.zeros_like(ent_ref)

    @pl.when((i == last) & (c == 0))
    def _():
        x = x_ref[...]                                  # (B, C)
        m = jnp.max(x, axis=1, keepdims=True)
        z = x - m
        ez = jnp.exp(z)
        s = jnp.sum(ez, axis=1, keepdims=True)
        logp = z - jnp.log(s)                           # log_softmax(x, dim=1)
        prob = ez / s                                   # softmax(x, dim=1)
        ent_ref[...] = jnp.sum(prob * logp, keepdims=True)[None]


# ---------------- loss on a pre-packed slab (preferred, amortized) ----------------
def regularization_and_entropy_loss_packed(x, lambda_1, lambda_2, regularization_weight,
                                           entropy_weight, param_slab, *,
                                           tile_rows=DEFAULT_TILE_ROWS):
    x = x.astype(jnp.float32)
    assert x.ndim == 2, "x must be (batch, classes)"
    B, C = x.shape
    num_splits, rows_per_split, lanes = param_slab.shape
    assert lanes == LANES
    align = _row_align(param_slab.dtype)
    tr = min(_round_up(tile_rows, align), rows_per_split)
    assert rows_per_split % tr == 0, \
        "pack_params and the loss must use the same tile_rows"
    n_inner = rows_per_split // tr

    # Explicit VMEM budget: 2x double-buffered param tile + resident x + outputs + slack.
    tile_bytes = tr * LANES * jnp.dtype(param_slab.dtype).itemsize
    vmem_limit = int(min(64 << 20,
                         max(16 << 20, 4 * tile_bytes + 2 * x.size * 4 + (2 << 20))))

    l1_part, l2_part, ent_part = pl.pallas_call(
        _loss_kernel,
        out_shape=(
            jax.ShapeDtypeStruct((num_splits, 8, LANES), jnp.float32),
            jax.ShapeDtypeStruct((num_splits, 8, LANES), jnp.float32),
            jax.ShapeDtypeStruct((num_splits, 1, 1), jnp.float32),
        ),
        grid_spec=pltpu.PrefetchScalarGridSpec(
            num_scalar_prefetch=0,
            grid=(num_splits, n_inner),
            in_specs=[
                pl.BlockSpec((1, tr, LANES), lambda c, i: (c, i, 0)),   # param stream
                pl.BlockSpec((B, C), lambda c, i: (0, 0)),              # logits, resident
            ],
            out_specs=(
                pl.BlockSpec((1, 8, LANES), lambda c, i: (c, 0, 0)),    # L1 partials
                pl.BlockSpec((1, 8, LANES), lambda c, i: (c, 0, 0)),    # L2 partials
                pl.BlockSpec((1, 1, 1), lambda c, i: (c, 0, 0)),        # entropy sum
            ),
        ),
        compiler_params=pltpu.CompilerParams(
            dimension_semantics=("parallel", "arbitrary"),   # shards || , reduction axis
            vmem_limit_bytes=vmem_limit,
        ),
    )(param_slab, x)

    # Tiny scalar epilogue (a few XLA ops): combine per-shard partials + weights.
    l1 = jnp.sum(l1_part)
    l2 = jnp.sum(l2_part)
    ent_sum = jnp.sum(ent_part)                 # only shard 0's slot is nonzero
    reg = regularization_weight * (lambda_1 * l1 + lambda_2 * l2)
    return reg - entropy_weight * ent_sum       # == reg + (-ent_w * sum(p * logp))


# ---------------- drop-in wrapper matching the PyTorch module signature ----------------
def regularization_and_entropy_loss(x, lambda_1, lambda_2, regularization_weight,
                                    entropy_weight, model_params, *,
                                    tile_rows=DEFAULT_TILE_ROWS,
                                    num_splits=DEFAULT_NUM_SPLITS):
    """Convenience form. In a training loop, prefer: slab = pack_params(params) once per
    update, then regularization_and_entropy_loss_packed(...) per loss evaluation."""
    slab = pack_params(model_params, tile_rows=tile_rows, num_splits=num_splits)
    return regularization_and_entropy_loss_packed(
        x, lambda_1, lambda_2, regularization_weight, entropy_weight, slab,
        tile_rows=tile_rows)


# ---------------- pure-JAX reference (mirrors the PyTorch forward) ----------------
def reference(x, lambda_1, lambda_2, regularization_weight, entropy_weight, model_params):
    l1 = sum(jnp.sum(jnp.abs(p)) for p in model_params)
    l2 = sum(jnp.sum(p ** 2.0) for p in model_params)
    reg = regularization_weight * (lambda_1 * l1 + lambda_2 * l2)
    ent = jax.nn.softmax(x, axis=1) * jax.nn.log_softmax(x, axis=1)
    ent = -1.0 * entropy_weight * jnp.sum(ent)
    return reg + ent


if __name__ == "__main__":
    key = jax.random.PRNGKey(0)
    k_x, k_w1, k_b1, k_w2, k_b2 = jax.random.split(key, 5)

    # Small shapes consistent with the module: logits (B, C) and a small param list.
    B, C = 8, 16
    x = jax.random.normal(k_x, (B, C), dtype=jnp.float32)
    model_params = [
        jax.random.normal(k_w1, (32, 16), dtype=jnp.float32),
        jax.random.normal(k_b1, (32,), dtype=jnp.float32),
        jax.random.normal(k_w2, (16, 32), dtype=jnp.float32),
        jax.random.normal(k_b2, (16,), dtype=jnp.float32),
    ]
    lambda_1, lambda_2 = 0.01, 0.001
    regularization_weight, entropy_weight = 0.1, 1.0

    ref = reference(x, lambda_1, lambda_2, regularization_weight, entropy_weight,
                    model_params)

    # Preferred path: pack the slab once, reuse it across loss evaluations.
    slab = pack_params(model_params)
    out = regularization_and_entropy_loss_packed(
        x, lambda_1, lambda_2, regularization_weight, entropy_weight, slab)
    out = jax.block_until_ready(out)
    assert out.shape == ()
    assert jnp.allclose(out, ref, rtol=1e-5, atol=1e-4), f"mismatch: {out} vs {ref}"

    # Also exercise multi-step accumulation (small tile, single shard) + drop-in wrapper.
    out2 = regularization_and_entropy_loss(
        x, lambda_1, lambda_2, regularization_weight, entropy_weight, model_params,
        tile_rows=8, num_splits=1)
    out2 = jax.block_until_ready(out2)
    assert jnp.allclose(out2, ref, rtol=1e-5, atol=1e-4), f"mismatch: {out2} vs {ref}"

    print("KERNEL_OK")
</pallas_src>

<mosaic_0001>
module attributes {stable_mosaic.version = 11 : i64} {
  func.func @_loss_kernel(%arg0: i32, %arg1: i32, %arg2: memref<1x8x128xf32, #tpu.memory_space<vmem>>, %arg3: memref<8x16xf32, #tpu.memory_space<vmem>>, %arg4: memref<1x8x128xf32, #tpu.memory_space<vmem>>, %arg5: memref<1x8x128xf32, #tpu.memory_space<vmem>>, %arg6: memref<1x1x1xf32, #tpu.memory_space<vmem>>) attributes {dimension_semantics = [#tpu.dimension_semantics<parallel>, #tpu.dimension_semantics<arbitrary>], iteration_bounds = array<i64: 2, 1>, scalar_prefetch = 0 : i64, scratch_operands = 0 : i64, tpu.core_type = #tpu.core_type<tc>, window_params = [{transform_indices = @transform_0, window_bounds = array<i64: 1, 8, 128>}, {pipeline_mode = #tpu.pipeline_mode<synchronous>, transform_indices = @transform_1, window_bounds = array<i64: 8, 16>}, {transform_indices = @transform_2, window_bounds = array<i64: 1, 8, 128>}, {transform_indices = @transform_3, window_bounds = array<i64: 1, 8, 128>}, {transform_indices = @transform_4, window_bounds = array<i64: 1, 1, 1>}]} {
    %c0_i32 = arith.constant 0 : i32
    %0 = arith.cmpi eq, %arg1, %c0_i32 : i32
    %1 = arith.extui %0 : i1 to i32
    %c0_i32_0 = arith.constant 0 : i32
    %2 = arith.cmpi ne, %1, %c0_i32_0 : i32
    scf.if %2 {
      %cst_22 = arith.constant 0.000000e+00 : f32
      %26 = vector.broadcast %cst_22 : f32 to vector<1x8x128xf32>
      %c0_23 = arith.constant 0 : index
      %c0_24 = arith.constant 0 : index
      %c0_25 = arith.constant 0 : index
      %27 = vector.load %arg4[%c0_23, %c0_24, %c0_25] : memref<1x8x128xf32, #tpu.memory_space<vmem>>, vector<1x8x128xf32>
      tpu.vector_store %arg4[%c0_23, %c0_24, %c0_25], %26 {strides = array<i32>} : memref<1x8x128xf32, #tpu.memory_space<vmem>>, vector<1x8x128xf32>,
      %cst_26 = arith.constant 0.000000e+00 : f32
      %28 = vector.broadcast %cst_26 : f32 to vector<1x8x128xf32>
      %c0_27 = arith.constant 0 : index
      %c0_28 = arith.constant 0 : index
      %c0_29 = arith.constant 0 : index
      %29 = vector.load %arg5[%c0_27, %c0_28, %c0_29] : memref<1x8x128xf32, #tpu.memory_space<vmem>>, vector<1x8x128xf32>
      tpu.vector_store %arg5[%c0_27, %c0_28, %c0_29], %28 {strides = array<i32>} : memref<1x8x128xf32, #tpu.memory_space<vmem>>, vector<1x8x128xf32>,
    } else {
    }
    %c0 = arith.constant 0 : index
    %c0_1 = arith.constant 0 : index
    %c0_2 = arith.constant 0 : index
    %3 = vector.load %arg2[%c0, %c0_1, %c0_2] : memref<1x8x128xf32, #tpu.memory_space<vmem>>, vector<1x8x128xf32>
    %c0_3 = arith.constant 0 : index
    %c0_4 = arith.constant 0 : index
    %c0_5 = arith.constant 0 : index
    %4 = vector.load %arg4[%c0_3, %c0_4, %c0_5] : memref<1x8x128xf32, #tpu.memory_space<vmem>>, vector<1x8x128xf32>
    %5 = math.absf %3 : vector<1x8x128xf32>
    %cst = arith.constant dense<0.000000e+00> : vector<8x128xf32>
    %6 = vector.multi_reduction <add>, %5, %cst [0] : vector<1x8x128xf32> to vector<8x128xf32>
    %7 = vector.shape_cast %6 : vector<8x128xf32> to vector<1x8x128xf32>
    %8 = arith.addf %4, %7 : vector<1x8x128xf32>
    %c0_6 = arith.constant 0 : index
    %c0_7 = arith.constant 0 : index
    %c0_8 = arith.constant 0 : index
    %9 = vector.load %arg4[%c0_6, %c0_7, %c0_8] : memref<1x8x128xf32, #tpu.memory_space<vmem>>, vector<1x8x128xf32>
    tpu.vector_store %arg4[%c0_6, %c0_7, %c0_8], %8 {strides = array<i32>} : memref<1x8x128xf32, #tpu.memory_space<vmem>>, vector<1x8x128xf32>,
    %c0_9 = arith.constant 0 : index
    %c0_10 = arith.constant 0 : index
    %c0_11 = arith.constant 0 : index
    %10 = vector.load %arg5[%c0_9, %c0_10, %c0_11] : memref<1x8x128xf32, #tpu.memory_space<vmem>>, vector<1x8x128xf32>
    %11 = arith.mulf %3, %3 : vector<1x8x128xf32>
    %cst_12 = arith.constant dense<0.000000e+00> : vector<8x128xf32>
    %12 = vector.multi_reduction <add>, %11, %cst_12 [0] : vector<1x8x128xf32> to vector<8x128xf32>
    %13 = vector.shape_cast %12 : vector<8x128xf32> to vector<1x8x128xf32>
    %14 = arith.addf %10, %13 : vector<1x8x128xf32>
    %c0_13 = arith.constant 0 : index
    %c0_14 = arith.constant 0 : index
    %c0_15 = arith.constant 0 : index
    %15 = vector.load %arg5[%c0_13, %c0_14, %c0_15] : memref<1x8x128xf32, #tpu.memory_space<vmem>>, vector<1x8x128xf32>
    tpu.vector_store %arg5[%c0_13, %c0_14, %c0_15], %14 {strides = array<i32>} : memref<1x8x128xf32, #tpu.memory_space<vmem>>, vector<1x8x128xf32>,
    %c0_i32_16 = arith.constant 0 : i32
    %16 = arith.cmpi eq, %arg1, %c0_i32_16 : i32
    %c0_i32_17 = arith.constant 0 : i32
    %17 = arith.cmpi ne, %arg0, %c0_i32_17 : i32
    %18 = arith.andi %16, %17 : i1
    %19 = arith.extui %18 : i1 to i32
    %c0_i32_18 = arith.constant 0 : i32
    %20 = arith.cmpi ne, %19, %c0_i32_18 : i32
    scf.if %20 {
      %cst_22 = arith.constant 0.000000e+00 : f32
      %26 = vector.broadcast %cst_22 : f32 to vector<1x1x1xf32>
      %c0_23 = arith.constant 0 : index
      %c0_24 = arith.constant 0 : index
      %c0_25 = arith.constant 0 : index
      %27 = vector.load %arg6[%c0_23, %c0_24, %c0_25] : memref<1x1x1xf32, #tpu.memory_space<vmem>>, vector<1x1x1xf32>
      tpu.vector_store %arg6[%c0_23, %c0_24, %c0_25], %26 {strides = array<i32>} : memref<1x1x1xf32, #tpu.memory_space<vmem>>, vector<1x1x1xf32>,
    } else {
    }
    %c0_i32_19 = arith.constant 0 : i32
    %21 = arith.cmpi eq, %arg1, %c0_i32_19 : i32
    %c0_i32_20 = arith.constant 0 : i32
    %22 = arith.cmpi eq, %arg0, %c0_i32_20 : i32
    %23 = arith.andi %21, %22 : i1
    %24 = arith.extui %23 : i1 to i32
    %c0_i32_21 = arith.constant 0 : i32
    %25 = arith.cmpi ne, %24, %c0_i32_21 : i32
    scf.if %25 {
      %c0_22 = arith.constant 0 : index
      %c0_23 = arith.constant 0 : index
      %26 = vector.load %arg3[%c0_22, %c0_23] : memref<8x16xf32, #tpu.memory_space<vmem>>, vector<8x16xf32>
      %cst_24 = arith.constant dense<0xFF800000> : vector<8xf32>
      %27 = vector.multi_reduction <maximumf>, %26, %cst_24 [1] : vector<8x16xf32> to vector<8xf32>
      %28 = vector.shape_cast %27 : vector<8xf32> to vector<8x1xf32>
      %29 = vector.broadcast %28 : vector<8x1xf32> to vector<8x16xf32>
      %30 = arith.subf %26, %29 : vector<8x16xf32>
      %31 = math.exp %30 : vector<8x16xf32>
      %cst_25 = arith.constant dense<0.000000e+00> : vector<8xf32>
      %32 = vector.multi_reduction <add>, %31, %cst_25 [1] : vector<8x16xf32> to vector<8xf32>
      %33 = vector.shape_cast %32 : vector<8xf32> to vector<8x1xf32>
      %34 = math.log %33 : vector<8x1xf32>
      %35 = vector.broadcast %34 : vector<8x1xf32> to vector<8x16xf32>
      %36 = arith.subf %30, %35 : vector<8x16xf32>
      %37 = vector.broadcast %33 : vector<8x1xf32> to vector<8x16xf32>
      %38 = arith.divf %31, %37 : vector<8x16xf32>
      %39 = arith.mulf %38, %36 : vector<8x16xf32>
      %40 = vector.shape_cast %39 : vector<8x16xf32> to vector<1x8x16xf32>
      %cst_26 = arith.constant dense<0.000000e+00> : vector<1xf32>
      %41 = vector.multi_reduction <add>, %40, %cst_26 [1, 2] : vector<1x8x16xf32> to vector<1xf32>
      %42 = vector.shape_cast %41 : vector<1xf32> to vector<1x1x1xf32>
      %43 = vector.extract %42[0, 0, 0] : f32 from vector<1x1x1xf32>
      %44 = vector.broadcast %43 : f32 to vector<1x1xf32>
      %45 = vector.shape_cast %44 : vector<1x1xf32> to vector<1x1x1xf32>
      %c0_27 = arith.constant 0 : index
      %c0_28 = arith.constant 0 : index
      %c0_29 = arith.constant 0 : index
      %46 = vector.load %arg6[%c0_27, %c0_28, %c0_29] : memref<1x1x1xf32, #tpu.memory_space<vmem>>, vector<1x1x1xf32>
      tpu.vector_store %arg6[%c0_27, %c0_28, %c0_29], %45 {strides = array<i32>} : memref<1x1x1xf32, #tpu.memory_space<vmem>>, vector<1x1x1xf32>,
    } else {
    }
    return
  }
  func.func @transform_0(%arg0: i32, %arg1: i32) -> (i32, i32, i32) {
    %c0_i32 = arith.constant 0 : i32
    %c0_i32_0 = arith.constant 0 : i32
    return %arg0, %arg1, %c0_i32 : i32, i32, i32
  }
  func.func @transform_1(%arg0: i32, %arg1: i32) -> (i32, i32) {
    %c0_i32 = arith.constant 0 : i32
    %c0_i32_0 = arith.constant 0 : i32
    %c0_i32_1 = arith.constant 0 : i32
    return %c0_i32, %c0_i32_0 : i32, i32
  }
  func.func @transform_2(%arg0: i32, %arg1: i32) -> (i32, i32, i32) {
    %c0_i32 = arith.constant 0 : i32
    %c0_i32_0 = arith.constant 0 : i32
    %c0_i32_1 = arith.constant 0 : i32
    return %arg0, %c0_i32, %c0_i32_0 : i32, i32, i32
  }
  func.func @transform_3(%arg0: i32, %arg1: i32) -> (i32, i32, i32) {
    %c0_i32 = arith.constant 0 : i32
    %c0_i32_0 = arith.constant 0 : i32
    %c0_i32_1 = arith.constant 0 : i32
    return %arg0, %c0_i32, %c0_i32_0 : i32, i32, i32
  }
  func.func @transform_4(%arg0: i32, %arg1: i32) -> (i32, i32, i32) {
    %c0_i32 = arith.constant 0 : i32
    %c0_i32_0 = arith.constant 0 : i32
    %c0_i32_1 = arith.constant 0 : i32
    return %arg0, %c0_i32, %c0_i32_0 : i32, i32, i32
  }
}

</mosaic_0001>

<llo_original>
// kernel: tpu_custom_call.1
$region0: #{tpu_custom_call.1}
  #allocation0 [shape = 'u32[]', space=smem, size = 0x4, offset = 0x4, fixed_abs, tag = 'smem constant byte address 0x4 - core index']
  #allocation1 [shape = 'u32[144,128]{1,0:T(1,128)}', space=vmem, size = 0x12000, scoped, tag = 'internal scratch']
  %s0 = inlined_call_operand.hbm [shape: f32[2,8,128], index: 0, kind: input, shape index: {}]
  %s1 = inlined_call_operand.hbm [shape: f32[8,16], index: 1, kind: input, shape index: {}]
  %s2 = inlined_call_operand.hbm [shape: f32[2,8,128], index: 2, kind: output, shape index: {0}]
  %s3 = inlined_call_operand.hbm [shape: f32[2,8,128], index: 3, kind: output, shape index: {1}]
  %s4 = inlined_call_operand.vmem [shape: f32[2,1,1], index: 4, kind: output, shape index: {2}]
  %5 = xla_tuple %s2, %s3, %s4
  %s6 = sld [smem:[#allocation0]]
  $region77: #{tpu_custom_call.1} parent=0
    _
  %s8 = ssub.s32 1, %s6
  %s9 = scalar_select 0, %s8, %s6
  $region1: #{tpu_custom_call.1} parent=0
    #allocation2 [shape = 'u8[8192]{0}', space=vmem, size = 0x2000, scoped, tag = 'input window, operand 0']
    #allocation3 [shape = 's32[2]{0}', space=sflag, size = 0x8, scoped, tag = 'scoped memory for tpu_custom_call.1']
    #allocation4 [shape = 's32[2]{0}', space=sflag, size = 0x8, scoped, tag = 'scoped memory for tpu_custom_call.1']
    #allocation5 [shape = 'u8[4096]{0}', space=vmem, size = 0x1000, scoped, tag = 'input window, operand 1, single buffered']
    #allocation6 [shape = 's32[1]{0}', space=sflag, size = 0x4, scoped, tag = 'scoped memory for tpu_custom_call.1']
    #allocation7 [shape = 'u8[8192]{0}', space=vmem, size = 0x2000, scoped, tag = 'output window, operand 0']
    #allocation8 [shape = 'u8[8192]{0}', space=vmem, size = 0x2000, scoped, tag = 'output window, operand 1']
    #allocation9 [shape = 's32[2]{0}', space=sflag, size = 0x8, scoped, tag = 'scoped memory for tpu_custom_call.1']
    %10 = vsyncpa [#allocation3], 0
    %s11 = scalar_lea.sflag [#allocation3], 1
    %12 = vsyncpa %s11, 0
    %13 = vsyncpa [#allocation6], 0
    %14 = vsyncpa [#allocation4], 0
    %s15 = scalar_lea.sflag [#allocation4], 1
    %16 = vsyncpa %s15, 0
    %17 = vsyncpa [#allocation9], 0
    %s18 = scalar_lea.sflag [#allocation9], 1
    %19 = vsyncpa %s18, 0
    loop: start=0, step=1, limit=4
    $region2: #{tpu_custom_call.1} parent=1 // loop_pre_header
      _
    $region3: #{tpu_custom_call.1} parent=1 // loop_header
      %s21 = sphi 0, %s25
      %p22 = scmp.ge.s32.totalorder %s21, 4
      %s28 = sphi 0, %s40
      %s29 = sphi 0, %s36
      %s30 = sphi 0, %s28
      %s31 = sphi 0, %s29
      %s32 = sphi 0, %s30
      %s33 = sphi 0, %s31
      %s45 = sphi 0, %s47
      %s48 = sphi 0, %s45
      %s49 = sphi 0, %s48
      %s65 = sphi 0, %s49
      %s69 = sphi 0, %s69
      %s71 = sphi 0, %s69
      %s72 = sphi 0, %s71
      %s86 = sphi 0, %s72
      %s92 = sphi 0, %s94
      %s95 = sphi 0, %s92
      %s96 = sphi 0, %s95
      %s112 = sphi 0, %s96
      %s118 = sphi 0, %s120
      %s121 = sphi 0, %s118
      %s122 = sphi 0, %s121
      %s138 = sphi 0, %s122
      %s144 = sphi 0, %s146
      %s147 = sphi 0, %s144
      %s148 = sphi 0, %s147
      %s164 = sphi 0, %s148
    $region4: #{tpu_custom_call.1} parent=1 // loop_header_branch
      %24 = sbr.rel (%p22) target = $region8
    $region5: #{tpu_custom_call.1} parent=1 // loop_body
      %s26 = ssub.s32 %s21, 1
      %s27 = ssub.s32 %s21, 2
      %s34 = sadd.s32 1, %s29
      %p35 = scmp.ge.s32.totalorder %s34, 1
      %s36 = scalar_select %p35, 0, %s34
      %s37 = sadd.s32 1, %s28
      %s38 = scalar_select %p35, %s37, %s28
      %p39 = scmp.ge.s32.totalorder %s38, 2
      %s40 = scalar_select %p39, 0, %s38
      %s41 = ssub.s32 %s28, %s40
      %s42 = ssub.s32 %s29, %s36
      %s43 = sor.u32 %s41, %s42
      %p44 = scmp.eq.s32.totalorder %s43, 0
      %s46 = sadd.s32 %s45, 1
      %s47 = scalar_select %p44, %s45, %s46
      %p50 = pneg %p44
      %p51 = scmp.eq.s32.totalorder %s21, 1
      %p52 = por %p50, %p51
      %p53 = scmp.ne.s32.totalorder %s45, %s48
      %p54 = scmp.eq.s32.totalorder %s21, 0
      %p55 = por %p53, %p54
      %p56 = scmp.ne.s32.totalorder %s45, %s48
      %p57 = scmp.eq.s32.totalorder %s26, 1
      %p58 = por %p56, %p57
      %p59 = scmp.ne.s32.totalorder %s48, %s49
      %p60 = scmp.eq.s32.totalorder %s26, 0
      %p61 = por %p59, %p60
      %p62 = scmp.ne.s32.totalorder %s48, %s49
      %p63 = scmp.eq.s32.totalorder %s27, 1
      %p64 = por %p62, %p63
      %p66 = scmp.ne.s32.totalorder %s49, %s65
      %p67 = scmp.eq.s32.totalorder %s27, 0
      %p68 = por %p66, %p67
      %s70 = sadd.s32 %s69, 1
      %p73 = scmp.eq.s32.totalorder %s21, 1
      %p74 = scmp.ne.s32.totalorder %s69, %s71
      %p75 = scmp.eq.s32.totalorder %s21, 0
      %p76 = por %p74, %p75
      %p77 = scmp.ne.s32.totalorder %s69, %s71
      %p78 = scmp.eq.s32.totalorder %s26, 1
      %p79 = por %p77, %p78
      %p80 = scmp.ne.s32.totalorder %s71, %s72
      %p81 = scmp.eq.s32.totalorder %s26, 0
      %p82 = por %p80, %p81
      %p83 = scmp.ne.s32.totalorder %s71, %s72
      %p84 = scmp.eq.s32.totalorder %s27, 1
      %p85 = por %p83, %p84
      %p87 = scmp.ne.s32.totalorder %s72, %s86
      %p88 = scmp.eq.s32.totalorder %s27, 0
      %p89 = por %p87, %p88
      %s90 = ssub.s32 %s28, %s40
      %p91 = scmp.eq.s32.totalorder %s90, 0
      %s93 = sadd.s32 %s92, 1
      %s94 = scalar_select %p91, %s92, %s93
      %p97 = pneg %p91
      %p98 = scmp.eq.s32.totalorder %s21, 1
      %p99 = por %p97, %p98
      %p100 = scmp.ne.s32.totalorder %s92, %s95
      %p101 = scmp.eq.s32.totalorder %s21, 0
      %p102 = por %p100, %p101
      %p103 = scmp.ne.s32.totalorder %s92, %s95
      %p104 = scmp.eq.s32.totalorder %s26, 1
      %p105 = por %p103, %p104
      %p106 = scmp.ne.s32.totalorder %s95, %s96
      %p107 = scmp.eq.s32.totalorder %s26, 0
      %p108 = por %p106, %p107
      %p109 = scmp.ne.s32.totalorder %s95, %s96
      %p110 = scmp.eq.s32.totalorder %s27, 1
      %p111 = por %p109, %p110
      %p113 = scmp.ne.s32.totalorder %s96, %s112
      %p114 = scmp.eq.s32.totalorder %s27, 0
      %p115 = por %p113, %p114
      %s116 = ssub.s32 %s28, %s40
      %p117 = scmp.eq.s32.totalorder %s116, 0
      %s119 = sadd.s32 %s118, 1
      %s120 = scalar_select %p117, %s118, %s119
      %p123 = pneg %p117
      %p124 = scmp.eq.s32.totalorder %s21, 1
      %p125 = por %p123, %p124
      %p126 = scmp.ne.s32.totalorder %s118, %s121
      %p127 = scmp.eq.s32.totalorder %s21, 0
      %p128 = por %p126, %p127
      %p129 = scmp.ne.s32.totalorder %s118, %s121
      %p130 = scmp.eq.s32.totalorder %s26, 1
      %p131 = por %p129, %p130
      %p132 = scmp.ne.s32.totalorder %s121, %s122
      %p133 = scmp.eq.s32.totalorder %s26, 0
      %p134 = por %p132, %p133
      %p135 = scmp.ne.s32.totalorder %s121, %s122
      %p136 = scmp.eq.s32.totalorder %s27, 1
      %p137 = por %p135, %p136
      %p139 = scmp.ne.s32.totalorder %s122, %s138
      %p140 = scmp.eq.s32.totalorder %s27, 0
      %p141 = por %p139, %p140
      %s142 = ssub.s32 %s28, %s40
      %p143 = scmp.eq.s32.totalorder %s142, 0
      %s145 = sadd.s32 %s144, 1
      %s146 = scalar_select %p143, %s144, %s145
      %p149 = pneg %p143
      %p150 = scmp.eq.s32.totalorder %s21, 1
      %p151 = por %p149, %p150
      %p152 = scmp.ne.s32.totalorder %s144, %s147
      %p153 = scmp.eq.s32.totalorder %s21, 0
      %p154 = por %p152, %p153
      %p155 = scmp.ne.s32.totalorder %s144, %s147
      %p156 = scmp.eq.s32.totalorder %s26, 1
      %p157 = por %p155, %p156
      %p158 = scmp.ne.s32.totalorder %s147, %s148
      %p159 = scmp.eq.s32.totalorder %s26, 0
      %p160 = por %p158, %p159
      %p161 = scmp.ne.s32.totalorder %s147, %s148
      %p162 = scmp.eq.s32.totalorder %s27, 1
      %p163 = por %p161, %p162
      %p165 = scmp.ne.s32.totalorder %s148, %s164
      %p166 = scmp.eq.s32.totalorder %s27, 0
      %p167 = por %p165, %p166
      %p168 = scmp.le.s32.totalorder 1, %s21
      %p169 = scmp.lt.s32.totalorder %s21, 3
      %p170 = pnand %p168, %p169
      %p171 = pneg %p170
      // Predicated region
      $region9: #{tpu_custom_call.1} parent=5 // pred_check
        _
      $region10: #{tpu_custom_call.1} parent=5 // pred_check_branch
        %173 = sbr.rel (%p170) target = $region12
      $region11: #{tpu_custom_call.1} parent=5 // pred_region
        %s174 = ssub.s32 %s21, 1
        // Predicated region
        $region13: #{tpu_custom_call.1} parent=11 // pred_check
          %p175 = pneg %p82
        $region14: #{tpu_custom_call.1} parent=11 // pred_check_branch
          %177 = sbr.rel (%p175) target = $region16
        $region15: #{tpu_custom_call.1} parent=11 // pred_region
          %s179 = ssub.s32 128, 128
          %180 = vsyncadd [#allocation6], %s179
          %s182 = sshll.u32 [#allocation5], 4
          %s183 = int_to_ptr.vmem [resolvable:$true] %s182
          %185 = dma.hbm_to_vmem [thread:$0]  %s1, 128, %s183, [#allocation6]
        $region16: #{tpu_custom_call.1} parent=11 // pred_fallthru
          _
      $region12: #{tpu_custom_call.1} parent=5 // pred_fallthru
        _
      %p186 = scmp.lt.s32.totalorder %s21, 2
      // Predicated region
      $region17: #{tpu_custom_call.1} parent=5 // pred_check
        %p187 = pneg %p186
      $region18: #{tpu_custom_call.1} parent=5 // pred_check_branch
        %189 = sbr.rel (%p187) target = $region20
      $region19: #{tpu_custom_call.1} parent=5 // pred_region
        // Predicated region
        $region21: #{tpu_custom_call.1} parent=19 // pred_check
          %p190 = pneg %p55
        $region22: #{tpu_custom_call.1} parent=19 // pred_check_branch
          %192 = sbr.rel (%p190) target = $region24
        $region23: #{tpu_custom_call.1} parent=19 // pred_region
          %s193 = sand.u32 %s45, 1
          %s194 = scalar_lea.sflag [#allocation3], %s193
          %s195 = sand.u32 %s45, 1
          %s196 = smul.addr %s195, 8
          %s197 = scalar_lea.vmem [#allocation2], %s196
          %s199 = ssub.s32 128, 128
          %200 = vsyncadd %s194, %s199
          %s201 = sadd.s32 %s29, %s28
          %s202 = smul.addr %s201, 128
          %s203 = scalar_lea.hbm %s0, %s202
          %s205 = sshll.u32 %s197, 4
          %s206 = int_to_ptr.vmem [resolvable:$true] %s205
          %208 = dma.hbm_to_vmem [thread:$0]  %s203, 128, %s206, %s194
        $region24: #{tpu_custom_call.1} parent=19 // pred_fallthru
          _
      $region20: #{tpu_custom_call.1} parent=5 // pred_fallthru
        _
      %p209 = scmp.le.s32.totalorder 1, %s21
      %p210 = scmp.lt.s32.totalorder %s21, 3
      %p211 = pnand %p209, %p210
      %p212 = pneg %p211
      // Predicated region
      $region25: #{tpu_custom_call.1} parent=5 // pred_check
        _
      $region26: #{tpu_custom_call.1} parent=5 // pred_check_branch
        %214 = sbr.rel (%p211) target = $region28
      $region27: #{tpu_custom_call.1} parent=5 // pred_region
        %s215 = ssub.s32 %s21, 1
        %s216 = sand.u32 %s48, 1
        %s217 = scalar_lea.sflag [#allocation3], %s216
        %s218 = sand.u32 %s48, 1
        %s219 = smul.addr %s218, 8
        %s220 = scalar_lea.vmem [#allocation2], %s219
        // Predicated region
        $region29: #{tpu_custom_call.1} parent=27 // pred_check
          %p221 = pneg %p61
        $region30: #{tpu_custom_call.1} parent=27 // pred_check_branch
          %223 = sbr.rel (%p221) target = $region32
        $region31: #{tpu_custom_call.1} parent=27 // pred_region
          %224 = dma.done %s217, 128
        $region32: #{tpu_custom_call.1} parent=27 // pred_fallthru
          _
        // Predicated region
        $region33: #{tpu_custom_call.1} parent=27 // pred_check
          %p225 = pneg %p82
        $region34: #{tpu_custom_call.1} parent=27 // pred_check_branch
          %227 = sbr.rel (%p225) target = $region36
        $region35: #{tpu_custom_call.1} parent=27 // pred_region
          %228 = dma.done [#allocation6], 128
        $region36: #{tpu_custom_call.1} parent=27 // pred_fallthru
          _
        %s229 = sand.u32 %s48, 1
        %s230 = scalar_lea.sflag [#allocation3], %s229
        %s231 = sand.u32 %s48, 1
        %s232 = smul.addr %s231, 8
        %s233 = scalar_lea.vmem [#allocation2], %s232
        %p234 = pneg %p61
        %p235 = pneg %p58
        %p236 = pneg %p82
        %p237 = pneg %p79
        %p238 = pneg %p108
        %p239 = pneg %p105
        %s240 = sand.u32 %s95, 1
        %s241 = scalar_lea.sflag [#allocation4], %s240
        %s242 = sand.u32 %s95, 1
        %s243 = smul.addr %s242, 8
        %s244 = scalar_lea.vmem [#allocation7], %s243
        %p245 = pneg %p134
        %p246 = pneg %p131
        %s247 = sand.u32 %s121, 1
        %s248 = scalar_lea.sflag [#allocation9], %s247
        %s249 = sand.u32 %s121, 1
        %s250 = smul.addr %s249, 8
        %s251 = scalar_lea.vmem [#allocation8], %s250
        %p252 = pneg %p160
        %p253 = pneg %p157
        %p254 = scmp.lt.s32.totalorder %s30, 1
        %s255 = scalar_select %p254, %s30, 1
        %s256 = scalar_lea.vmem %s4, %s255
        %p257 = scmp.lt.s32.totalorder %s30, 1
        %s258 = scalar_select %p257, %s30, 1
        %s259 = scalar_lea.vmem %s4, %s258
        %p260 = scmp.eq.s32.totalorder %s31, 0
        // Predicated region
        $region37: #{tpu_custom_call.1} parent=27 // pred_check
          %p261 = pneg %p260
        $region38: #{tpu_custom_call.1} parent=27 // pred_check_branch
          %263 = sbr.rel (%p261) target = $region40
        $region39: #{tpu_custom_call.1} parent=27 // pred_region
          %264 = vst [vmem:[%s244] sm:$0xff] 0.0
          %265 = vst [vmem:[%s251] sm:$0xff] 0.0
        $region40: #{tpu_custom_call.1} parent=27 // pred_fallthru
          _
        %v266 = vld [vmem:[%s220] sm:$0xff]
        %v267 = vld [vmem:[%s244] sm:$0xff]
        %v268 = vand.u32 2147483647, %v266
        %v269 = vadd.f32 %v268, 0.0
        %v270 = vadd.f32 %v267, %v269
        %271 = vst [vmem:[%s244] sm:$0xff] %v270
        %v272 = vld [vmem:[%s251] sm:$0xff]
        %v273 = vmul.f32 %v266, %v266
        %v274 = vadd.f32 %v273, 0.0
        %v275 = vadd.f32 %v272, %v274
        %276 = vst [vmem:[%s251] sm:$0xff] %v275
        %p277 = scmp.ne.s32.totalorder %s30, 0
        %p278 = pnand %p260, %p277
        %p279 = pneg %p278
        // Predicated region
        $region41: #{tpu_custom_call.1} parent=27 // pred_check
          _
        $region42: #{tpu_custom_call.1} parent=27 // pred_check_branch
          %281 = sbr.rel (%p278) target = $region44
        $region43: #{tpu_custom_call.1} parent=27 // pred_region
          %vm282 = vcmask 0
          %283 = vst.msk [vmem:[%s259] sm:$0x1] %vm282, 0.0
        $region44: #{tpu_custom_call.1} parent=27 // pred_fallthru
          _
        %p284 = scmp.eq.s32.totalorder %s30, 0
        %p285 = pnand %p260, %p284
        %p286 = pneg %p285
        // Predicated region
        $region45: #{tpu_custom_call.1} parent=27 // pred_check
          _
        $region46: #{tpu_custom_call.1} parent=27 // pred_check_branch
          %288 = sbr.rel (%p285) target = $region48
        $region47: #{tpu_custom_call.1} parent=27 // pred_region
          %v289 = vld [vmem:[#allocation5] sm:$0xff]
          %vm290 = vcmask 130048
          %v291 = vsel %vm290, %v289, -inf
          %292 = vmax.xlane.f32.xlu0 %v291
          %v293 = vpop.xlane.xlu0 %292
          %v294 = vsub.f32 %v289, %v293
          %v295 = vmul.f32 %v294, 1.442695
          %v296 = vpow.pop %v295
          %v297 = vsel %vm290, %v296, 0.0
          %298 = vadd.xlane.f32.xlu0 %v297
          %v299 = vpop.xlane.xlu0 %298
          %v300 = vlog2.pop %v299
          %v301 = vmul.f32 %v300, 0.6931472
          %v302 = vsub.f32 %v294, %v301
          %v303 = vrcp.pop %v299
          %v304 = vmul.f32 %v296, %v303
          %v305 = vmul.f32 %v304, %v302
          %v306 = vsel %vm290, %v305, 0.0
          %307 = vadd.xlane.f32.xlu0 %v306
          %v308 = vpop.xlane.xlu0 %307
          %v309 = vrot.slane %v308, 4
          %v310 = vadd.f32 %v308, %v309
          %v311 = vrot.slane %v310, 2
          %v312 = vadd.f32 %v310, %v311
          %v313 = vrot.slane %v312, 1
          %v314 = vadd.f32 %v312, %v313
          %s315 = vtos %v314
          %v316 = vstv %s315
          %vm317 = vcmask 0
          %318 = vst.msk [vmem:[%s259] sm:$0x1] %vm317, %v316
        $region48: #{tpu_custom_call.1} parent=27 // pred_fallthru
          _
        %s319 = sand.u32 %s95, 1
        %s320 = scalar_lea.sflag [#allocation4], %s319
        %s321 = sand.u32 %s95, 1
        %s322 = smul.addr %s321, 8
        %s323 = scalar_lea.vmem [#allocation7], %s322
        %s324 = sand.u32 %s121, 1
        %s325 = scalar_lea.sflag [#allocation9], %s324
        %s326 = sand.u32 %s121, 1
        %s327 = smul.addr %s326, 8
        %s328 = scalar_lea.vmem [#allocation8], %s327
        %p329 = scmp.lt.s32.totalorder %s30, 1
        %s330 = scalar_select %p329, %s30, 1
        %s331 = scalar_lea.vmem %s4, %s330
        // Predicated region
        $region49: #{tpu_custom_call.1} parent=27 // pred_check
          %p332 = pneg %p105
        $region50: #{tpu_custom_call.1} parent=27 // pred_check_branch
          %334 = sbr.rel (%p332) target = $region52
        $region51: #{tpu_custom_call.1} parent=27 // pred_region
          %s336 = ssub.s32 128, 128
          %337 = vsyncadd %s320, %s336
          %s338 = smul.addr %s30, 128
          %s339 = scalar_lea.hbm %s2, %s338
          %s341 = sshll.u32 %s323, 4
          %s342 = int_to_ptr.vmem [resolvable:$true] %s341
          %344 = dma.vmem_to_hbm [thread:$0]  %s342, 128, %s339, %s320
        $region52: #{tpu_custom_call.1} parent=27 // pred_fallthru
          _
        // Predicated region
        $region53: #{tpu_custom_call.1} parent=27 // pred_check
          %p345 = pneg %p131
        $region54: #{tpu_custom_call.1} parent=27 // pred_check_branch
          %347 = sbr.rel (%p345) target = $region56
        $region55: #{tpu_custom_call.1} parent=27 // pred_region
          %s349 = ssub.s32 128, 128
          %350 = vsyncadd %s325, %s349
          %s351 = smul.addr %s30, 128
          %s352 = scalar_lea.hbm %s3, %s351
          %s354 = sshll.u32 %s328, 4
          %s355 = int_to_ptr.vmem [resolvable:$true] %s354
          %357 = dma.vmem_to_hbm [thread:$0]  %s355, 128, %s352, %s325
        $region56: #{tpu_custom_call.1} parent=27 // pred_fallthru
          _
        // Predicated region
        $region57: #{tpu_custom_call.1} parent=27 // pred_check
          %p358 = pneg %p157
        $region58: #{tpu_custom_call.1} parent=27 // pred_check_branch
          %360 = sbr.rel (%p358) target = $region60
        $region59: #{tpu_custom_call.1} parent=27 // pred_region
          _
        $region60: #{tpu_custom_call.1} parent=27 // pred_fallthru
          _
      $region28: #{tpu_custom_call.1} parent=5 // pred_fallthru
        _
      %p361 = scmp.le.s32.totalorder 2, %s21
      // Predicated region
      $region61: #{tpu_custom_call.1} parent=5 // pred_check
        %p362 = pneg %p361
      $region62: #{tpu_custom_call.1} parent=5 // pred_check_branch
        %364 = sbr.rel (%p362) target = $region64
      $region63: #{tpu_custom_call.1} parent=5 // pred_region
        %s365 = ssub.s32 %s21, 2
        // Predicated region
        $region65: #{tpu_custom_call.1} parent=63 // pred_check
          %p366 = pneg %p111
        $region66: #{tpu_custom_call.1} parent=63 // pred_check_branch
          %368 = sbr.rel (%p366) target = $region68
        $region67: #{tpu_custom_call.1} parent=63 // pred_region
          %s369 = sand.u32 %s96, 1
          %s370 = scalar_lea.sflag [#allocation4], %s369
          %s371 = sand.u32 %s96, 1
          %s372 = smul.addr %s371, 8
          %s373 = scalar_lea.vmem [#allocation7], %s372
          %374 = dma.done %s370, 128
        $region68: #{tpu_custom_call.1} parent=63 // pred_fallthru
          _
        // Predicated region
        $region69: #{tpu_custom_call.1} parent=63 // pred_check
          %p375 = pneg %p137
        $region70: #{tpu_custom_call.1} parent=63 // pred_check_branch
          %377 = sbr.rel (%p375) target = $region72
        $region71: #{tpu_custom_call.1} parent=63 // pred_region
          %s378 = sand.u32 %s122, 1
          %s379 = scalar_lea.sflag [#allocation9], %s378
          %s380 = sand.u32 %s122, 1
          %s381 = smul.addr %s380, 8
          %s382 = scalar_lea.vmem [#allocation8], %s381
          %383 = dma.done %s379, 128
        $region72: #{tpu_custom_call.1} parent=63 // pred_fallthru
          _
        // Predicated region
        $region73: #{tpu_custom_call.1} parent=63 // pred_check
          %p384 = pneg %p163
        $region74: #{tpu_custom_call.1} parent=63 // pred_check_branch
          %386 = sbr.rel (%p384) target = $region76
        $region75: #{tpu_custom_call.1} parent=63 // pred_region
          %p387 = scmp.lt.s32.totalorder %s32, 1
          %s388 = scalar_select %p387, %s32, 1
          %s389 = scalar_lea.vmem %s4, %s388
        $region76: #{tpu_custom_call.1} parent=63 // pred_fallthru
          _
      $region64: #{tpu_custom_call.1} parent=5 // pred_fallthru
        _
    $region6: #{tpu_custom_call.1} parent=1 // loop_footer
      %s25 = sadd.s32 1, %s21
    $region7: #{tpu_custom_call.1} parent=1 // loop_footer_branch
      %20 = sbr.rel target = $region3
    $region8: #{tpu_custom_call.1} parent=1 // loop_exit
      _
    %390 = vsyncpa [#allocation3], 1
    %s391 = scalar_lea.sflag [#allocation3], 1
    %392 = vsyncpa %s391, 1
    %393 = vsyncpa [#allocation6], 1
    %394 = vsyncpa [#allocation4], 1
    %s395 = scalar_lea.sflag [#allocation4], 1
    %396 = vsyncpa %s395, 1
    %397 = vsyncpa [#allocation9], 1
    %s398 = scalar_lea.sflag [#allocation9], 1
    %399 = vsyncpa %s398, 1

</llo_original>
